<compile_context>
chip_gen: v7x
topology: tpu7x:2x2x1
jax: 0.10.0
libtpu: 0.0.40
codegen_flags: <defaults>
</compile_context>

<pallas_src>
import math
import jax
import jax.numpy as jnp
from jax.experimental import pallas as pl
from jax.experimental.pallas import tpu as pltpu


# ------------------------------- helpers -------------------------------------
def _round_up(x, m):
    return ((x + m - 1) // m) * m


def _pad_axis(x, target, axis):
    pad = target - x.shape[axis]
    if pad == 0:
        return x
    widths = [(0, 0)] * x.ndim
    widths[axis] = (0, pad)
    return jnp.pad(x, widths)


# ----------------------------- Pallas kernels ---------------------------------
# Multi-K-step kernels: f32 accumulator resident in VMEM across the k axis.
def _mm_bias_kernel(w_ref, col_ref, bias_ref, o_ref, acc_ref):
    # w_ref: (toc, tk) bf16   col_ref: (1, tk, tl) bf16
    # bias_ref: (toc, 1) f32  o_ref: (1, toc, tl) f32  acc_ref: (toc, tl) f32
    k = pl.program_id(3)

    @pl.when(k == 0)
    def _():
        acc_ref[...] = jnp.zeros_like(acc_ref)

    acc_ref[...] += jnp.dot(w_ref[...], col_ref[0],
                            preferred_element_type=jnp.float32)

    @pl.when(k == pl.num_programs(3) - 1)
    def _():
        o_ref[0] = (acc_ref[...] + bias_ref[...]).astype(o_ref.dtype)


def _mm_kernel(w_ref, col_ref, o_ref, acc_ref):
    k = pl.program_id(3)

    @pl.when(k == 0)
    def _():
        acc_ref[...] = jnp.zeros_like(acc_ref)

    acc_ref[...] += jnp.dot(w_ref[...], col_ref[0],
                            preferred_element_type=jnp.float32)

    @pl.when(k == pl.num_programs(3) - 1)
    def _():
        o_ref[0] = acc_ref[...].astype(o_ref.dtype)


# Single-K-step kernels: whole contraction in one block -> no scratch, no gates.
def _mm_bias_single_kernel(w_ref, col_ref, bias_ref, o_ref):
    o_ref[0] = (jnp.dot(w_ref[...], col_ref[0],
                        preferred_element_type=jnp.float32)
                + bias_ref[...]).astype(o_ref.dtype)


def _mm_single_kernel(w_ref, col_ref, o_ref):
    o_ref[0] = jnp.dot(w_ref[...], col_ref[0],
                       preferred_element_type=jnp.float32).astype(o_ref.dtype)


def _pick_tiles(OC, K, L):
    """Tile sizes bounded so double-buffered VMEM stays well under 32 MiB."""
    # output-channel (matmul M / sublane) tile
    OCp = _round_up(OC, 8)
    if OCp <= 256:
        toc = OCp
    elif OCp % 256 == 0:
        toc = 256
    elif OCp % 128 == 0:
        toc = 128
    else:
        toc = 256
        OCp = _round_up(OCp, 256)
    # spatial (matmul N / lane) tile: lane-dense, as big as possible with
    # padding waste capped at 12.5%.
    Lp0 = _round_up(L, 128)
    tl = 128
    for cand in (1024, 512, 256, 128):
        if cand <= Lp0 and (_round_up(L, cand) - L) * 8 <= _round_up(L, cand):
            tl = cand
            break
    Lp = _round_up(L, tl)
    # contraction tile: full-K block when it fits (no host-side K padding,
    # single-k fast path); otherwise largest 128-multiple dividing padded K.
    if K <= 2048:
        tk, Kp = K, K
    else:
        Kp = _round_up(K, 128)
        tk = 128
        for cand in (2048, 1024, 512, 256, 128):
            if Kp % cand == 0:
                tk = cand
                break
    return toc, OCp, tl, Lp, tk, Kp


def conv_matmul_pallas(w2, col, bias=None, *, compute_dtype=jnp.bfloat16,
                       out_dtype=jnp.float32):
    """out[b, oc, l] = sum_k w2[oc, k] * col[b, k, l] (+ bias[oc]).

    w2:  (OC, K)    flattened conv weights (C*KH*KW row-major)
    col: (B, K, L)  im2col / unfold of the input (L = OH*OW)
    bias: (OC,) or None
    returns (B, OC, L) in out_dtype.
    """
    OC, K = w2.shape
    B, Kc, L = col.shape
    assert Kc == K
    toc, OCp, tl, Lp, tk, Kp = _pick_tiles(OC, K, L)
    nk = Kp // tk

    w_p = _pad_axis(_pad_axis(w2.astype(compute_dtype), OCp, 0), Kp, 1)
    col_p = _pad_axis(_pad_axis(col.astype(compute_dtype), Kp, 1), Lp, 2)

    itemsize = jnp.dtype(compute_dtype).itemsize
    flops = 2 * B * OCp * Lp * Kp
    bytes_accessed = (w_p.size * itemsize + col_p.size * itemsize
                      + B * OCp * Lp * jnp.dtype(out_dtype).itemsize)

    if nk == 1:
        # Single-K-step fast path: 3-D grid, no accumulator scratch.
        grid = (B, OCp // toc, Lp // tl)
        w_spec = pl.BlockSpec((toc, tk), lambda b, i, j: (i, 0))
        col_spec = pl.BlockSpec((1, tk, tl), lambda b, i, j: (b, 0, j))
        out_spec = pl.BlockSpec((1, toc, tl), lambda b, i, j: (b, i, j))
        bias_spec = pl.BlockSpec((toc, 1), lambda b, i, j: (i, 0))
        dims = ("parallel", "parallel", "parallel")
        scratch = []
        kernel_bias, kernel_nobias = _mm_bias_single_kernel, _mm_single_kernel
    else:
        grid = (B, OCp // toc, Lp // tl, nk)        # reduction axis (k) last
        w_spec = pl.BlockSpec((toc, tk), lambda b, i, j, k: (i, k))
        col_spec = pl.BlockSpec((1, tk, tl), lambda b, i, j, k: (b, k, j))
        out_spec = pl.BlockSpec((1, toc, tl), lambda b, i, j, k: (b, i, j))
        bias_spec = pl.BlockSpec((toc, 1), lambda b, i, j, k: (i, 0))
        dims = ("parallel", "parallel", "parallel", "arbitrary")
        scratch = [pltpu.VMEM((toc, tl), jnp.float32)]
        kernel_bias, kernel_nobias = _mm_bias_kernel, _mm_kernel

    if bias is not None:
        bias_p = _pad_axis(bias.astype(jnp.float32)[:, None], OCp, 0)  # (OCp,1)
        kernel = kernel_bias
        in_specs = [w_spec, col_spec, bias_spec]
        args = (w_p, col_p, bias_p)
        bytes_accessed += OCp * 4
    else:
        kernel = kernel_nobias
        in_specs = [w_spec, col_spec]
        args = (w_p, col_p)

    out = pl.pallas_call(
        kernel,
        out_shape=jax.ShapeDtypeStruct((B, OCp, Lp), out_dtype),
        grid_spec=pltpu.PrefetchScalarGridSpec(
            num_scalar_prefetch=0,
            grid=grid,
            in_specs=in_specs,
            out_specs=out_spec,
            scratch_shapes=scratch,
        ),
        compiler_params=pltpu.CompilerParams(
            dimension_semantics=dims,
            vmem_limit_bytes=32 * 1024 * 1024,
        ),
        cost_estimate=pl.CostEstimate(flops=flops, transcendentals=0,
                                      bytes_accessed=bytes_accessed),
    )(*args)
    return out[:, :OC, :L]


# ------------------------------ glue (JAX) ------------------------------------
def _im2col(x, kernel_size, stride, padding, dilation):
    """x: (B, C, H, W) -> (B, C*KH*KW, OH*OW) with torch.unfold ordering."""
    B, C, H, W = x.shape
    kh, kw = kernel_size
    sh, sw = stride
    ph, pw = padding
    dh, dw = dilation
    xp = jnp.pad(x, ((0, 0), (0, 0), (ph, ph), (pw, pw)))
    OH = (H + 2 * ph - dh * (kh - 1) - 1) // sh + 1
    OW = (W + 2 * pw - dw * (kw - 1) - 1) // sw + 1
    cols = []
    for i in range(kh):
        for j in range(kw):
            ii, jj = i * dh, j * dw
            patch = xp[:, :, ii:ii + sh * OH:sh, jj:jj + sw * OW:sw]
            cols.append(patch)                       # (B, C, OH, OW)
    col = jnp.stack(cols, axis=2)                    # (B, C, KH*KW, OH, OW)
    col = col.reshape(B, C * kh * kw, OH * OW)       # channel-major, like unfold
    return col, OH, OW


class Conv2dSpPallas:
    """Deterministic-init re-implementation of Conv2d_sp eval forward."""

    def __init__(self, in_channels, out_channels, kernel_size,
                 stride=1, padding=0, dilation=1, groups=1, bias=True,
                 compute_dtype=jnp.bfloat16, key=jax.random.PRNGKey(0)):
        assert groups == 1, "groups > 1 not implemented"
        self.in_channels = in_channels
        self.out_channels = out_channels
        self.kernel_size = ((kernel_size, kernel_size)
                            if isinstance(kernel_size, int) else tuple(kernel_size))
        self.stride = (stride, stride) if isinstance(stride, int) else tuple(stride)
        self.padding = (padding, padding) if isinstance(padding, int) else tuple(padding)
        self.dilation = (dilation, dilation) if isinstance(dilation, int) else tuple(dilation)
        self.has_bias = bias
        self.compute_dtype = compute_dtype

        kh, kw = self.kernel_size
        fan_in = in_channels * kh * kw
        # kaiming_uniform_(a=sqrt(5)) -> U(-1/sqrt(fan_in), 1/sqrt(fan_in))
        bound = 1.0 / math.sqrt(fan_in)
        kw_key, kb_key = jax.random.split(key)
        self.fp_weight = jax.random.uniform(
            kw_key, (out_channels, in_channels, kh, kw),
            minval=-bound, maxval=bound, dtype=jnp.float32)
        if bias:
            self.fp_bias = jax.random.uniform(
                kb_key, (out_channels,), minval=-bound, maxval=bound,
                dtype=jnp.float32)
        else:
            self.fp_bias = None

    def __call__(self, x):
        # x: (B, C, H, W) float32 (eval-path forward)
        B = x.shape[0]
        # cast to compute dtype BEFORE im2col -> halves the unfolded buffer
        x_c = x.astype(self.compute_dtype)
        col, OH, OW = _im2col(x_c, self.kernel_size, self.stride,
                              self.padding, self.dilation)          # (B, K, L)
        w2 = self.fp_weight.reshape(self.out_channels, -1)           # (OC, K)
        out = conv_matmul_pallas(w2, col,
                                 self.fp_bias if self.has_bias else None,
                                 compute_dtype=self.compute_dtype)   # (B, OC, L)
        return out.reshape(B, self.out_channels, OH, OW)


if __name__ == "__main__":
    key = jax.random.PRNGKey(0)
    xkey, pkey = jax.random.split(key)

    B, C, H, W = 2, 4, 16, 16
    OC, KS, STRIDE, PAD = 8, 3, 1, 1

    x = jax.random.normal(xkey, (B, C, H, W), dtype=jnp.float32)
    conv = Conv2dSpPallas(C, OC, KS, stride=STRIDE, padding=PAD, bias=True,
                          key=pkey)

    y = conv(x)
    y = jax.block_until_ready(y)

    # sanity check against full-precision XLA conv
    y_ref = jax.lax.conv_general_dilated(
        x, conv.fp_weight, window_strides=(STRIDE, STRIDE),
        padding=[(PAD, PAD), (PAD, PAD)],
        dimension_numbers=("NCHW", "OIHW", "NCHW"),
        precision=jax.lax.Precision.HIGHEST)
    y_ref = y_ref + conv.fp_bias[None, :, None, None]
    assert y.shape == (B, OC, H, W)
    # bf16 matmul inputs (f32 accumulation) vs f32 reference
    assert jnp.allclose(y, y_ref, atol=2e-2, rtol=2e-2), \
        float(jnp.max(jnp.abs(y - y_ref)))

    print("KERNEL_OK")
</pallas_src>

<mosaic_0001>
module attributes {stable_mosaic.version = 11 : i64} {
  func.func @_mm_bias_single_kernel(%arg0: i32, %arg1: i32, %arg2: i32, %arg3: memref<8x36xbf16, #tpu.memory_space<vmem>>, %arg4: memref<1x36x256xbf16, #tpu.memory_space<vmem>>, %arg5: memref<8x1xf32, #tpu.memory_space<vmem>>, %arg6: memref<1x8x256xf32, #tpu.memory_space<vmem>>) attributes {dimension_semantics = [#tpu.dimension_semantics<parallel>, #tpu.dimension_semantics<parallel>, #tpu.dimension_semantics<parallel>], iteration_bounds = array<i64: 2, 1, 1>, scalar_prefetch = 0 : i64, scratch_operands = 0 : i64, tpu.core_type = #tpu.core_type<tc>, window_params = [{transform_indices = @transform_0, window_bounds = array<i64: 8, 36>}, {transform_indices = @transform_1, window_bounds = array<i64: 1, 36, 256>}, {transform_indices = @transform_2, window_bounds = array<i64: 8, 1>}, {transform_indices = @transform_3, window_bounds = array<i64: 1, 8, 256>}]} {
    %c0 = arith.constant 0 : index
    %c0_0 = arith.constant 0 : index
    %0 = vector.load %arg3[%c0, %c0_0] : memref<8x36xbf16, #tpu.memory_space<vmem>>, vector<8x36xbf16>
    %c0_1 = arith.constant 0 : index
    %c0_2 = arith.constant 0 : index
    %c0_3 = arith.constant 0 : index
    %1 = vector.load %arg4[%c0_1, %c0_2, %c0_3] : memref<1x36x256xbf16, #tpu.memory_space<vmem>>, vector<1x36x256xbf16>
    %2 = vector.shape_cast %1 : vector<1x36x256xbf16> to vector<36x256xbf16>
    %cst = arith.constant dense<0.000000e+00> : vector<8x256xf32>
    %3 = tpu.matmul %0, %2, %cst {dimension_numbers = #tpu.dot_dimension_numbers<[1], [0], [0], [1], [0, 0, 1, 1], [], []>} : vector<8x36xbf16>, vector<36x256xbf16>, vector<8x256xf32> -> vector<8x256xf32>
    %c0_4 = arith.constant 0 : index
    %c0_5 = arith.constant 0 : index
    %4 = vector.load %arg5[%c0_4, %c0_5] : memref<8x1xf32, #tpu.memory_space<vmem>>, vector<8x1xf32>
    %5 = vector.broadcast %4 : vector<8x1xf32> to vector<8x256xf32>
    %6 = arith.addf %3, %5 : vector<8x256xf32>
    %c0_6 = arith.constant 0 : index
    %c0_7 = arith.constant 0 : index
    %c0_8 = arith.constant 0 : index
    %7 = vector.load %arg6[%c0_6, %c0_7, %c0_8] : memref<1x8x256xf32, #tpu.memory_space<vmem>>, vector<1x8x256xf32>
    %8 = vector.shape_cast %7 : vector<1x8x256xf32> to vector<8x256xf32>
    %9 = vector.shape_cast %6 : vector<8x256xf32> to vector<1x8x256xf32>
    tpu.vector_store %arg6[%c0_6, %c0_7, %c0_8], %9 {strides = array<i32>} : memref<1x8x256xf32, #tpu.memory_space<vmem>>, vector<1x8x256xf32>,
    return
  }
  func.func @transform_0(%arg0: i32, %arg1: i32, %arg2: i32) -> (i32, i32) {
    %c0_i32 = arith.constant 0 : i32
    %c0_i32_0 = arith.constant 0 : i32
    return %arg1, %c0_i32 : i32, i32
  }
  func.func @transform_1(%arg0: i32, %arg1: i32, %arg2: i32) -> (i32, i32, i32) {
    %c0_i32 = arith.constant 0 : i32
    %c0_i32_0 = arith.constant 0 : i32
    return %arg0, %c0_i32, %arg2 : i32, i32, i32
  }
  func.func @transform_2(%arg0: i32, %arg1: i32, %arg2: i32) -> (i32, i32) {
    %c0_i32 = arith.constant 0 : i32
    %c0_i32_0 = arith.constant 0 : i32
    return %arg1, %c0_i32 : i32, i32
  }
  func.func @transform_3(%arg0: i32, %arg1: i32, %arg2: i32) -> (i32, i32, i32) {
    %c0_i32 = arith.constant 0 : i32
    return %arg0, %arg1, %arg2 : i32, i32, i32
  }
}

</mosaic_0001>

<llo_original>
// kernel: tpu_custom_call.1
$region0: #{tpu_custom_call.1}
  #allocation0 [shape = 'u32[]', space=smem, size = 0x4, offset = 0x4, fixed_abs, tag = 'smem constant byte address 0x4 - core index']
  #allocation1 [shape = 'u32[144,128]{1,0:T(1,128)}', space=vmem, size = 0x12000, scoped, tag = 'internal scratch']
  %s0 = inlined_call_operand.vmem [shape: bf16[8,36], index: 0, kind: input, shape index: {}]
  %s1 = inlined_call_operand.vmem [shape: bf16[2,36,256], index: 1, kind: input, shape index: {}]
  %s2 = inlined_call_operand.vmem [shape: f32[8,1], index: 2, kind: input, shape index: {}]
  %s3 = inlined_call_operand.hbm [shape: f32[2,8,256], index: 3, kind: output, shape index: {}]
  %s4 = sld [smem:[#allocation0]]
  $region45: #{tpu_custom_call.1} parent=0
    _
  %s6 = ssub.s32 1, %s4
  %s7 = scalar_select 0, %s6, %s4
  $region1: #{tpu_custom_call.1} parent=0
    #allocation2 [shape = 'u8[16384]{0}', space=vmem, size = 0x4000, scoped, tag = 'output window, operand 0']
    #allocation3 [shape = 's32[2]{0}', space=sflag, size = 0x8, scoped, tag = 'scoped memory for tpu_custom_call.1']
    %8 = vsyncpa [#allocation3], 0
    %s9 = scalar_lea.sflag [#allocation3], 1
    %10 = vsyncpa %s9, 0
    loop: start=0, step=1, limit=4
    $region2: #{tpu_custom_call.1} parent=1 // loop_pre_header
      _
    $region3: #{tpu_custom_call.1} parent=1 // loop_header
      %s12 = sphi 0, %s16
      %p13 = scmp.ge.s32.totalorder %s12, 4
      %s19 = sphi 0, %s38
      %s20 = sphi 0, %s34
      %s21 = sphi 0, %s30
      %s22 = sphi 0, %s19
      %s23 = sphi 0, %s20
      %s24 = sphi 0, %s21
      %s25 = sphi 0, %s22
      %s26 = sphi 0, %s23
      %s27 = sphi 0, %s24
      %s41 = sphi 0, %s43
      %s44 = sphi 0, %s41
      %s45 = sphi 0, %s44
      %s61 = sphi 0, %s45
      %s69 = sphi 0, %s71
      %s72 = sphi 0, %s69
      %s73 = sphi 0, %s72
      %s89 = sphi 0, %s73
      %s95 = sphi 0, %s97
      %s98 = sphi 0, %s95
      %s99 = sphi 0, %s98
      %s115 = sphi 0, %s99
      %s125 = sphi 0, %s127
      %s128 = sphi 0, %s125
      %s129 = sphi 0, %s128
      %s145 = sphi 0, %s129
    $region4: #{tpu_custom_call.1} parent=1 // loop_header_branch
      %15 = sbr.rel (%p13) target = $region8
    $region5: #{tpu_custom_call.1} parent=1 // loop_body
      %s17 = ssub.s32 %s12, 1
      %s18 = ssub.s32 %s12, 2
      %s28 = sadd.s32 1, %s21
      %p29 = scmp.ge.s32.totalorder %s28, 1
      %s30 = scalar_select %p29, 0, %s28
      %s31 = sadd.s32 1, %s20
      %s32 = scalar_select %p29, %s31, %s20
      %p33 = scmp.ge.s32.totalorder %s32, 1
      %s34 = scalar_select %p33, 0, %s32
      %s35 = sadd.s32 1, %s19
      %s36 = scalar_select %p33, %s35, %s19
      %p37 = scmp.ge.s32.totalorder %s36, 2
      %s38 = scalar_select %p37, 0, %s36
      %s39 = ssub.s32 %s20, %s34
      %p40 = scmp.eq.s32.totalorder %s39, 0
      %s42 = sadd.s32 %s41, 1
      %s43 = scalar_select %p40, %s41, %s42
      %p46 = pneg %p40
      %p47 = scmp.eq.s32.totalorder %s12, 1
      %p48 = por %p46, %p47
      %p49 = scmp.ne.s32.totalorder %s41, %s44
      %p50 = scmp.eq.s32.totalorder %s12, 0
      %p51 = por %p49, %p50
      %p52 = scmp.ne.s32.totalorder %s41, %s44
      %p53 = scmp.eq.s32.totalorder %s17, 1
      %p54 = por %p52, %p53
      %p55 = scmp.ne.s32.totalorder %s44, %s45
      %p56 = scmp.eq.s32.totalorder %s17, 0
      %p57 = por %p55, %p56
      %p58 = scmp.ne.s32.totalorder %s44, %s45
      %p59 = scmp.eq.s32.totalorder %s18, 1
      %p60 = por %p58, %p59
      %p62 = scmp.ne.s32.totalorder %s45, %s61
      %p63 = scmp.eq.s32.totalorder %s18, 0
      %p64 = por %p62, %p63
      %s65 = ssub.s32 %s19, %s38
      %s66 = ssub.s32 %s21, %s30
      %s67 = sor.u32 %s65, %s66
      %p68 = scmp.eq.s32.totalorder %s67, 0
      %s70 = sadd.s32 %s69, 1
      %s71 = scalar_select %p68, %s69, %s70
      %p74 = pneg %p68
      %p75 = scmp.eq.s32.totalorder %s12, 1
      %p76 = por %p74, %p75
      %p77 = scmp.ne.s32.totalorder %s69, %s72
      %p78 = scmp.eq.s32.totalorder %s12, 0
      %p79 = por %p77, %p78
      %p80 = scmp.ne.s32.totalorder %s69, %s72
      %p81 = scmp.eq.s32.totalorder %s17, 1
      %p82 = por %p80, %p81
      %p83 = scmp.ne.s32.totalorder %s72, %s73
      %p84 = scmp.eq.s32.totalorder %s17, 0
      %p85 = por %p83, %p84
      %p86 = scmp.ne.s32.totalorder %s72, %s73
      %p87 = scmp.eq.s32.totalorder %s18, 1
      %p88 = por %p86, %p87
      %p90 = scmp.ne.s32.totalorder %s73, %s89
      %p91 = scmp.eq.s32.totalorder %s18, 0
      %p92 = por %p90, %p91
      %s93 = ssub.s32 %s20, %s34
      %p94 = scmp.eq.s32.totalorder %s93, 0
      %s96 = sadd.s32 %s95, 1
      %s97 = scalar_select %p94, %s95, %s96
      %p100 = pneg %p94
      %p101 = scmp.eq.s32.totalorder %s12, 1
      %p102 = por %p100, %p101
      %p103 = scmp.ne.s32.totalorder %s95, %s98
      %p104 = scmp.eq.s32.totalorder %s12, 0
      %p105 = por %p103, %p104
      %p106 = scmp.ne.s32.totalorder %s95, %s98
      %p107 = scmp.eq.s32.totalorder %s17, 1
      %p108 = por %p106, %p107
      %p109 = scmp.ne.s32.totalorder %s98, %s99
      %p110 = scmp.eq.s32.totalorder %s17, 0
      %p111 = por %p109, %p110
      %p112 = scmp.ne.s32.totalorder %s98, %s99
      %p113 = scmp.eq.s32.totalorder %s18, 1
      %p114 = por %p112, %p113
      %p116 = scmp.ne.s32.totalorder %s99, %s115
      %p117 = scmp.eq.s32.totalorder %s18, 0
      %p118 = por %p116, %p117
      %s119 = ssub.s32 %s19, %s38
      %s120 = ssub.s32 %s20, %s34
      %s121 = sor.u32 %s119, %s120
      %s122 = ssub.s32 %s21, %s30
      %s123 = sor.u32 %s121, %s122
      %p124 = scmp.eq.s32.totalorder %s123, 0
      %s126 = sadd.s32 %s125, 1
      %s127 = scalar_select %p124, %s125, %s126
      %p130 = pneg %p124
      %p131 = scmp.eq.s32.totalorder %s12, 1
      %p132 = por %p130, %p131
      %p133 = scmp.ne.s32.totalorder %s125, %s128
      %p134 = scmp.eq.s32.totalorder %s12, 0
      %p135 = por %p133, %p134
      %p136 = scmp.ne.s32.totalorder %s125, %s128
      %p137 = scmp.eq.s32.totalorder %s17, 1
      %p138 = por %p136, %p137
      %p139 = scmp.ne.s32.totalorder %s128, %s129
      %p140 = scmp.eq.s32.totalorder %s17, 0
      %p141 = por %p139, %p140
      %p142 = scmp.ne.s32.totalorder %s128, %s129
      %p143 = scmp.eq.s32.totalorder %s18, 1
      %p144 = por %p142, %p143
      %p146 = scmp.ne.s32.totalorder %s129, %s145
      %p147 = scmp.eq.s32.totalorder %s18, 0
      %p148 = por %p146, %p147
      %p149 = scmp.le.s32.totalorder 1, %s12
      %p150 = scmp.lt.s32.totalorder %s12, 3
      %p151 = pnand %p149, %p150
      %p152 = pneg %p151
      // Predicated region
      $region9: #{tpu_custom_call.1} parent=5 // pred_check
        _
      $region10: #{tpu_custom_call.1} parent=5 // pred_check_branch
        %154 = sbr.rel (%p151) target = $region12
      $region11: #{tpu_custom_call.1} parent=5 // pred_region
        %s155 = ssub.s32 %s12, 1
        // Predicated region
        $region13: #{tpu_custom_call.1} parent=11 // pred_check
          %p156 = pneg %p57
        $region14: #{tpu_custom_call.1} parent=11 // pred_check_branch
          %158 = sbr.rel (%p156) target = $region16
        $region15: #{tpu_custom_call.1} parent=11 // pred_region
          %p159 = scmp.lt.s32.totalorder %s23, 0
          %s160 = scalar_select %p159, %s23, 0
          %s161 = smul.addr %s160, 4
          %s162 = scalar_lea.vmem %s0, %s161
        $region16: #{tpu_custom_call.1} parent=11 // pred_fallthru
          _
        // Predicated region
        $region17: #{tpu_custom_call.1} parent=11 // pred_check
          %p163 = pneg %p111
        $region18: #{tpu_custom_call.1} parent=11 // pred_check_branch
          %165 = sbr.rel (%p163) target = $region20
        $region19: #{tpu_custom_call.1} parent=11 // pred_region
          %p166 = scmp.lt.s32.totalorder %s23, 0
          %s167 = scalar_select %p166, %s23, 0
          %s168 = smul.addr %s167, 8
          %s169 = scalar_lea.vmem %s2, %s168
        $region20: #{tpu_custom_call.1} parent=11 // pred_fallthru
          _
      $region12: #{tpu_custom_call.1} parent=5 // pred_fallthru
        _
      %p170 = scmp.lt.s32.totalorder %s12, 2
      // Predicated region
      $region21: #{tpu_custom_call.1} parent=5 // pred_check
        %p171 = pneg %p170
      $region22: #{tpu_custom_call.1} parent=5 // pred_check_branch
        %173 = sbr.rel (%p171) target = $region24
      $region23: #{tpu_custom_call.1} parent=5 // pred_region
        // Predicated region
        $region25: #{tpu_custom_call.1} parent=23 // pred_check
          %p174 = pneg %p79
        $region26: #{tpu_custom_call.1} parent=23 // pred_check_branch
          %176 = sbr.rel (%p174) target = $region28
        $region27: #{tpu_custom_call.1} parent=23 // pred_region
          %s177 = smul.u32 2, %s21
          %p178 = scmp.lt.s32.totalorder %s19, 1
          %s179 = scalar_select %p178, %s19, 1
          %p180 = scmp.lt.s32.totalorder %s177, 1
          %s181 = scalar_select %p180, %s177, 1
          %s182 = smul.addr %s179, 10
          %s183 = sadd.s32 %s181, %s182
          %s184 = smul.addr %s183, 4
          %s185 = scalar_lea.vmem %s1, %s184
          %s186 = smul.u32 2, %s21
        $region28: #{tpu_custom_call.1} parent=23 // pred_fallthru
          _
      $region24: #{tpu_custom_call.1} parent=5 // pred_fallthru
        _
      %p187 = scmp.le.s32.totalorder 1, %s12
      %p188 = scmp.lt.s32.totalorder %s12, 3
      %p189 = pnand %p187, %p188
      %p190 = pneg %p189
      // Predicated region
      $region29: #{tpu_custom_call.1} parent=5 // pred_check
        _
      $region30: #{tpu_custom_call.1} parent=5 // pred_check_branch
        %192 = sbr.rel (%p189) target = $region32
      $region31: #{tpu_custom_call.1} parent=5 // pred_region
        %s193 = ssub.s32 %s12, 1
        %p194 = scmp.lt.s32.totalorder %s23, 0
        %s195 = scalar_select %p194, %s23, 0
        %s196 = smul.addr %s195, 4
        %s197 = scalar_lea.vmem %s0, %s196
        %p198 = pneg %p57
        %p199 = pneg %p54
        %s200 = smul.u32 2, %s24
        %p201 = scmp.lt.s32.totalorder %s22, 1
        %s202 = scalar_select %p201, %s22, 1
        %p203 = scmp.lt.s32.totalorder %s200, 1
        %s204 = scalar_select %p203, %s200, 1
        %s205 = smul.addr %s202, 10
        %s206 = sadd.s32 %s204, %s205
        %s207 = smul.addr %s206, 4
        %s208 = scalar_lea.vmem %s1, %s207
        %p209 = pneg %p85
        %p210 = pneg %p82
        %p211 = scmp.lt.s32.totalorder %s23, 0
        %s212 = scalar_select %p211, %s23, 0
        %s213 = smul.addr %s212, 8
        %s214 = scalar_lea.vmem %s2, %s213
        %p215 = pneg %p111
        %p216 = pneg %p108
        %p217 = pneg %p141
        %p218 = pneg %p138
        %s219 = sand.u32 %s128, 1
        %s220 = scalar_lea.sflag [#allocation3], %s219
        %s221 = sand.u32 %s128, 1
        %s222 = smul.addr %s221, 16
        %s223 = scalar_lea.vmem [#allocation2], %s222
        %p224 = scmp.lt.s32.totalorder %s23, 0
        %s225 = scalar_select %p224, %s23, 0
        %s226 = smul.addr %s225, 4
        %s227 = scalar_lea.vmem %s0, %s226
        %s228 = smul.u32 2, %s24
        %p229 = scmp.lt.s32.totalorder %s22, 1
        %s230 = scalar_select %p229, %s22, 1
        %p231 = scmp.lt.s32.totalorder %s228, 1
        %s232 = scalar_select %p231, %s228, 1
        %s233 = smul.addr %s230, 10
        %s234 = sadd.s32 %s232, %s233
        %s235 = smul.addr %s234, 4
        %s236 = scalar_lea.vmem %s1, %s235
        %s237 = smul.u32 2, %s24
        %p238 = scmp.lt.s32.totalorder %s23, 0
        %s239 = scalar_select %p238, %s23, 0
        %s240 = smul.addr %s239, 8
        %s241 = scalar_lea.vmem %s2, %s240
        %s242 = smul.u32 2, %s24
        %v244 = vld [vmem:[%s227] sm:$0xf]
        %v245 = vld [vmem:[%s236] sm:$0xff]
        %v246 = vld [vmem:[%s236 + $0x8] sm:$0xff]
        %v247 = vld [vmem:[%s236 + $0x10] sm:$0xff]
        %v248 = vld [vmem:[%s236 + $0x18] sm:$0xff]
        %v249 = vld [vmem:[%s236 + $0x20] sm:$0x33]
        %v250 = vld [vmem:[%s241] sm:$0xff]
        %252 = vset.pattern.permute.xlu0 0
        %253 = vperm.xlu0 %252, %v250
        %v254 = vpop.permute.xlu0 %253
        %v261 = vunpack.c.l.b16 %v245
        %v262 = vunpack.c.h.b16 %v245
        %v263 = vunpack.c.l.b16 %v246
        %v264 = vunpack.c.h.b16 %v246
        %v265 = vunpack.c.l.b16 %v247
        %v266 = vunpack.c.h.b16 %v247
        %v267 = vunpack.c.l.b16 %v248
        %v268 = vunpack.c.h.b16 %v248
        %v269 = vunpack.c.l.b16 %v249
        %v270 = vunpack.c.h.b16 %v249
        %v271 = vpack.c.b16 %v263, %v261
        %v272 = vpack.c.b16 %v264, %v262
        %v273 = vpack.c.b16 %v267, %v265
        %v274 = vpack.c.b16 %v268, %v266
        %v275 = vpack.c.b16 %v269, %v269
        %v276 = vpack.c.b16 %v270, %v270
        %vm281 = vcmask 293888
        %v283 = vsel %vm281, %v244, 0
        %vm285 = vcmask 1041408
        %v287 = vsel %vm285, %v275, 0
        %v290 = vsel %vm285, %v276, 0
        %292 = vmatprep.subr.bf16.mxu0 %v272
        %293 = vmatpush1.bf16.msra.mxu0 %v271
        %294 = vmatprep.subr.bf16.mxu0 %v274
        %295 = vmatpush1.bf16.msra.mxu0 %v273
        %296 = vmatprep.subr.bf16.mxu0 %v290
        %297 = vmatpush1.bf16.msra.mxu0 %v287
        %298 = vmatprep.subr.bf16.mxu0 0
        %299 = vmatpush1.bf16.msra.mxu0 0
        %300 = vmatprep.subr.bf16.mxu0 0
        %301 = vmatpush1.bf16.msra.mxu0 0
        %302 = vmatprep.subr.bf16.mxu0 0
        %303 = vmatpush1.bf16.msra.mxu0 0
        %304 = vmatprep.subr.bf16.mxu0 0
        %305 = vmatpush1.bf16.msra.mxu0 0
        %306 = vmatprep.subr.bf16.mxu0 0
        %307 = vmatpush1.bf16.msra.mxu0 0
        %308 = vmatprep.subr.bf16.mxu0 0
        %309 = vmatpush1.bf16.msra.mxu0 0
        %310 = vmatprep.subr.bf16.mxu0 0
        %311 = vmatpush1.bf16.msra.mxu0 0
        %312 = vmatprep.subr.bf16.mxu0 0
        %313 = vmatpush1.bf16.msra.mxu0 0
        %314 = vmatprep.subr.bf16.mxu0 0
        %315 = vmatpush1.bf16.msra.mxu0 0
        %316 = vmatprep.subr.bf16.mxu0 0
        %317 = vmatpush1.bf16.msra.mxu0 0
        %318 = vmatprep.subr.bf16.mxu0 0
        %319 = vmatpush1.bf16.msra.mxu0 0
        %320 = vmatprep.subr.bf16.mxu0 0
        %321 = vmatpush1.bf16.msra.mxu0 0
        %322 = vmatprep.subr.bf16.mxu0 0
        %323 = vmatpush1.bf16.msra.mxu0 0
        %324 = vmatprep.mubr.bf16.mxu0 0
        %325 = vmatmul.mubr.bf16.gmra.mrb[0].mxu0 %v283
        %v326 = vpop.f32.mrb[0].mxu0
        %v327 = vadd.f32 %v254, %v326
        %v328 = vpop.f32.mrb[0].mxu0
        %v329 = vadd.f32 %v254, %v328
        %v330 = vpop.f32.mrb[0].mxu0
        %v331 = vpop.f32.mrb[0].mxu0
        %332 = vdwg.mxu0
        %333 = vst [vmem:[%s223] sm:$0xff] %v327
        %334 = vst [vmem:[%s223 + $0x8] sm:$0xff] %v329
        %s335 = sand.u32 %s128, 1
        %s336 = scalar_lea.sflag [#allocation3], %s335
        %s337 = sand.u32 %s128, 1
        %s338 = smul.addr %s337, 16
        %s339 = scalar_lea.vmem [#allocation2], %s338
        // Predicated region
        $region33: #{tpu_custom_call.1} parent=31 // pred_check
          %p340 = pneg %p138
        $region34: #{tpu_custom_call.1} parent=31 // pred_check_branch
          %342 = sbr.rel (%p340) target = $region36
        $region35: #{tpu_custom_call.1} parent=31 // pred_region
          %s343 = smul.u32 2, %s24
          %s345 = ssub.s32 256, 256
          %346 = vsyncadd %s336, %s345
          %s347 = smul.addr %s23, 2
          %s348 = sadd.s32 %s343, %s347
          %s349 = smul.addr %s22, 2
          %s350 = sadd.s32 %s348, %s349
          %s351 = smul.addr %s350, 128
          %s352 = scalar_lea.hbm %s3, %s351
          %s354 = sshll.u32 %s339, 4
          %s355 = int_to_ptr.vmem [resolvable:$true] %s354
          %357 = dma.vmem_to_hbm [thread:$0]  %s355, 256, %s352, %s336
        $region36: #{tpu_custom_call.1} parent=31 // pred_fallthru
          _
      $region32: #{tpu_custom_call.1} parent=5 // pred_fallthru
        _
      %p358 = scmp.le.s32.totalorder 2, %s12
      // Predicated region
      $region37: #{tpu_custom_call.1} parent=5 // pred_check
        %p359 = pneg %p358
      $region38: #{tpu_custom_call.1} parent=5 // pred_check_branch
        %361 = sbr.rel (%p359) target = $region40
      $region39: #{tpu_custom_call.1} parent=5 // pred_region
        %s362 = ssub.s32 %s12, 2
        // Predicated region
        $region41: #{tpu_custom_call.1} parent=39 // pred_check
          %p363 = pneg %p144
        $region42: #{tpu_custom_call.1} parent=39 // pred_check_branch
          %365 = sbr.rel (%p363) target = $region44
        $region43: #{tpu_custom_call.1} parent=39 // pred_region
          %s366 = sand.u32 %s129, 1
          %s367 = scalar_lea.sflag [#allocation3], %s366
          %s368 = sand.u32 %s129, 1
          %s369 = smul.addr %s368, 16
          %s370 = scalar_lea.vmem [#allocation2], %s369
          %371 = dma.done %s367, 256
        $region44: #{tpu_custom_call.1} parent=39 // pred_fallthru
          _
      $region40: #{tpu_custom_call.1} parent=5 // pred_fallthru
        _
    $region6: #{tpu_custom_call.1} parent=1 // loop_footer
      %s16 = sadd.s32 1, %s12
    $region7: #{tpu_custom_call.1} parent=1 // loop_footer_branch
      %11 = sbr.rel target = $region3
    $region8: #{tpu_custom_call.1} parent=1 // loop_exit
      _
    %372 = vsyncpa [#allocation3], 1
    %s373 = scalar_lea.sflag [#allocation3], 1
    %374 = vsyncpa %s373, 1

</llo_original>
